<compile_context>
chip_gen: v7x
topology: tpu7x:2x2x1
jax: 0.10.0
libtpu: 0.0.40
codegen_flags: <defaults>
</compile_context>

<pallas_src>
import functools

import jax
import jax.numpy as jnp
from jax.experimental import pallas as pl
from jax.experimental.pallas import tpu as pltpu

_HIGHEST = jax.lax.Precision.HIGHEST


# ----------------------------------------------------------------------------
# Quantum circuit simulation (plain JAX, analytic <Z> expectation values)
# ----------------------------------------------------------------------------
def _apply_1q(state, gate, wire):
    state = jnp.tensordot(gate, state, axes=([1], [wire]), precision=_HIGHEST)
    return jnp.moveaxis(state, 0, wire)


def _apply_cnot(state, control, target):
    # CNOT = X on `target` within the control=1 subspace -> exact permutation,
    # no matmul (avoids any matmul-precision rounding of the state).
    state = jnp.moveaxis(state, (control, target), (0, 1))
    state = jnp.stack([state[0], state[1, ::-1]], axis=0)
    return jnp.moveaxis(state, (0, 1), (control, target))


def _circuit_expvals(params, n_qubits, n_layers):
    """PennyLane circuit: per layer RY/RZ on each qubit, CNOT chain between
    layers; returns analytic <Z_i> for every qubit."""
    p = params.reshape(n_layers, n_qubits, 2).astype(jnp.float32)
    state = jnp.zeros((2,) * n_qubits, dtype=jnp.complex64)
    state = state.at[(0,) * n_qubits].set(1.0 + 0.0j)
    zero_c = jnp.zeros((), jnp.complex64)
    for layer in range(n_layers):
        for q in range(n_qubits):
            th = p[layer, q, 0]
            c, s = jnp.cos(th / 2), jnp.sin(th / 2)
            ry = jnp.stack([jnp.stack([c, -s]), jnp.stack([s, c])]).astype(jnp.complex64)
            state = _apply_1q(state, ry, q)
            ph = p[layer, q, 1]
            e_m = jnp.exp(-1j * ph.astype(jnp.complex64) / 2)
            e_p = jnp.exp(1j * ph.astype(jnp.complex64) / 2)
            rz = jnp.stack([jnp.stack([e_m, zero_c]), jnp.stack([zero_c, e_p])])
            state = _apply_1q(state, rz, q)
        if layer < n_layers - 1:
            for q in range(n_qubits - 1):
                state = _apply_cnot(state, q, q + 1)
    probs = jnp.abs(state) ** 2
    expvals = []
    for q in range(n_qubits):
        other = tuple(a for a in range(n_qubits) if a != q)
        marg = probs.sum(axis=other)
        expvals.append(marg[0] - marg[1])  # <Z_q> = p0 - p1
    return jnp.stack(expvals).astype(jnp.float32)


def quantum_feature_table(quantum_params, n_qubits, n_layers):
    """(vocab, L*Q*2) -> (vocab, Q) analytic <Z> features."""
    return jax.vmap(lambda pr: _circuit_expvals(pr, n_qubits, n_layers))(quantum_params)


# ----------------------------------------------------------------------------
# VMEM sizing helpers (generation-aware)
# ----------------------------------------------------------------------------
def _round_up(x, m):
    return ((x + m - 1) // m) * m


def _vmem_capacity_bytes():
    try:
        info = pltpu.get_tpu_info()
        cap = int(getattr(info, "vmem_capacity_bytes", 0) or 0)
        if cap > 0:
            return cap
    except Exception:
        pass
    return 64 * 1024 * 1024  # conservative fallback: v7x per-TensorCore VMEM


def _vmem_budget_bytes():
    # Tile-planning budget: well inside both the physical capacity (64 MiB on
    # v7x) and the default scoped limits (~16 MiB v5e / ~32 MiB v6e, v7x).  The
    # actual scoped limit is raised explicitly via vmem_limit_bytes below.
    return min(_vmem_capacity_bytes() // 4, 16 * 1024 * 1024)


def _vmem_limit_bytes(need_bytes):
    cap = _vmem_capacity_bytes()
    want = need_bytes + need_bytes // 4 + (4 << 20)  # 25% + 4 MiB headroom
    return int(min(max(32 << 20, want), (cap * 3) // 4))


def _row_bytes(cols, itemsize=4):
    # one row of a VMEM-resident 32-bit tile: lane dim padded to 128
    return _round_up(max(cols, 1), 128) * itemsize


def _tile_bytes(rows, cols, itemsize=4):
    # full VMEM footprint of a (rows, cols) 32-bit block ((8,128) native tiling)
    return _round_up(max(rows, 1), 8) * _row_bytes(cols, itemsize)


# ----------------------------------------------------------------------------
# Pallas kernel 1 (one-shot): table = tanh(feats @ W.T + b), tiled over vocab
# ----------------------------------------------------------------------------
def _embed_table_kernel(f_ref, w_ref, b_ref, t_ref):
    # f_ref: (tv, Q), w_ref: (Q, E), b_ref: (1, E), t_ref: (tv, E)
    z = jnp.dot(f_ref[...], w_ref[...], precision=_HIGHEST,
                preferred_element_type=jnp.float32)
    t_ref[...] = jnp.tanh(z + b_ref[...])


def pallas_embed_table(feats, w, b):
    """feats: (V, Q) f32, w: (E, Q), b: (E,) -> tanh(feats @ w.T + b) of shape (V, E)."""
    v, q = feats.shape
    e = w.shape[0]
    w_t = jnp.transpose(w).astype(jnp.float32)      # (Q, E)
    b_row = b.astype(jnp.float32).reshape(1, e)

    budget = _vmem_budget_bytes()
    # resident weight/bias (allocated double-buffered by the default pipeliner)
    fixed = 2 * (_tile_bytes(q, e) + _tile_bytes(1, e))
    per_row = 2 * (_row_bytes(q) + _row_bytes(e))   # feats tile + out tile (x2 bufs)
    tv = min(v, 2048, max(8, (budget - fixed) // max(per_row, 1)))
    if tv < v:
        tv = max(8, (tv // 8) * 8)
    grid = (pl.cdiv(v, tv),)
    need = fixed + tv * per_row

    return pl.pallas_call(
        _embed_table_kernel,
        out_shape=jax.ShapeDtypeStruct((v, e), jnp.float32),
        grid_spec=pltpu.PrefetchScalarGridSpec(
            num_scalar_prefetch=0,
            grid=grid,
            in_specs=[
                pl.BlockSpec((tv, q), lambda i: (i, 0)),
                pl.BlockSpec((q, e), lambda i: (0, 0)),   # resident (constant index)
                pl.BlockSpec((1, e), lambda i: (0, 0)),   # resident (constant index)
            ],
            out_specs=pl.BlockSpec((tv, e), lambda i: (i, 0)),
        ),
        compiler_params=pltpu.CompilerParams(
            dimension_semantics=("parallel",),
            vmem_limit_bytes=_vmem_limit_bytes(need),
        ),
        cost_estimate=pl.CostEstimate(
            flops=2 * v * q * e,
            transcendentals=v * e,
            bytes_accessed=4 * (v * q + q * e + e + v * e),
        ),
    )(feats.astype(jnp.float32), w_t, b_row)


# ----------------------------------------------------------------------------
# Pallas kernel 2a (hot path, small vocab): one-hot MXU gather, table in VMEM
# ----------------------------------------------------------------------------
def _onehot_gather_kernel(ids_ref, tab_ref, o_ref):
    # ids_ref: (tm, 1) int32, tab_ref: (V, E) f32 resident, o_ref: (tm, E) f32
    tm = o_ref.shape[0]
    v = tab_ref.shape[0]
    iota = jax.lax.broadcasted_iota(jnp.int32, (tm, v), 1)
    onehot = (ids_ref[...] == iota).astype(jnp.float32)          # (tm, V)
    # Row gather as a one-hot matmul on the MXU.  HIGHEST precision makes the
    # "copy" exact (default f32 matmul decomposes to bf16 passes -> ~2e-3 err).
    o_ref[...] = jnp.dot(onehot, tab_ref[...], precision=_HIGHEST,
                         preferred_element_type=jnp.float32)


def _gather_embed_onehot(ids_flat, table, budget):
    n = ids_flat.shape[0]
    v, e = table.shape
    # VMEM accounting: resident table (double-buffered alloc), out tile (x2),
    # (tm,1) id tile padded to (8,128) tiles (x2), one-hot + iota temporaries.
    table_bytes = 2 * _tile_bytes(v, e)
    per_row = 2 * _row_bytes(e) + 2 * _row_bytes(1) + 2 * _row_bytes(v)
    tm = min(4096, max(8, (budget - table_bytes) // max(per_row, 1)))
    if n > 8:
        # keep >= 2 row blocks when possible so both v7x TensorCores get work
        tm = min(tm, pl.next_power_of_2(max(8, (n + 1) // 2)))
    tm = max(8, (tm // 8) * 8)

    grid = pl.cdiv(n, tm)
    n_pad = grid * tm
    ids = ids_flat
    if n_pad != n:
        # only the tiny 4 B/token id stream is padded; the output is written at
        # its exact (n, E) shape (final partial row block masked by Pallas).
        ids = jnp.pad(ids, (0, n_pad - n))
    ids2d = ids.reshape(n_pad, 1)
    need = table_bytes + tm * per_row

    return pl.pallas_call(
        _onehot_gather_kernel,
        out_shape=jax.ShapeDtypeStruct((n, e), jnp.float32),
        grid_spec=pltpu.PrefetchScalarGridSpec(
            num_scalar_prefetch=0,
            grid=(grid,),
            in_specs=[
                pl.BlockSpec((tm, 1), lambda i: (i, 0)),    # token-id tile
                pl.BlockSpec((v, e), lambda i: (0, 0)),     # table resident (one DMA)
            ],
            out_specs=pl.BlockSpec((tm, e), lambda i: (i, 0)),
        ),
        compiler_params=pltpu.CompilerParams(
            dimension_semantics=("parallel",),
            vmem_limit_bytes=_vmem_limit_bytes(need),
        ),
        cost_estimate=pl.CostEstimate(
            flops=2 * n_pad * v * e,
            transcendentals=0,
            bytes_accessed=4 * (n_pad + v * e + n * e),
        ),
    )(ids2d, table)


# ----------------------------------------------------------------------------
# Pallas kernel 2b (hot path, large vocab): scalar-prefetched true row gather
# ----------------------------------------------------------------------------
def _row_gather_kernel(ids_ref, row_ref, o_ref):
    # ids_ref lives in SMEM (scalar prefetch) and is consumed by the index_maps.
    del ids_ref
    o_ref[...] = row_ref[...]


def _gather_embed_rows(ids_flat, table):
    # TODO(synk): for very long id streams (>~256K tokens) chunk the ids at the
    # wrapper level so the scalar-prefetch SMEM footprint stays bounded.
    n = ids_flat.shape[0]
    v, e = table.shape
    need = 4 * _tile_bytes(1, e) + 4 * n
    return pl.pallas_call(
        _row_gather_kernel,
        out_shape=jax.ShapeDtypeStruct((n, e), jnp.float32),
        grid_spec=pltpu.PrefetchScalarGridSpec(
            num_scalar_prefetch=1,
            grid=(n,),
            in_specs=[
                # data-dependent row gather: DMA table[ids[i]] for grid step i
                pl.BlockSpec((1, e), lambda i, ids: (ids[i], 0)),
            ],
            out_specs=pl.BlockSpec((1, e), lambda i, ids: (i, 0)),
        ),
        compiler_params=pltpu.CompilerParams(
            dimension_semantics=("arbitrary",),
            vmem_limit_bytes=_vmem_limit_bytes(need),
        ),
    )(ids_flat, table)


def pallas_gather_embed(token_ids, table, *, gather_impl="auto"):
    """token_ids: (B, S) int, table: (V, E) f32 -> (B, S, E) f32."""
    bsz, seq = token_ids.shape
    v, e = table.shape
    ids = token_ids.reshape(-1).astype(jnp.int32)
    # Clamp so out-of-range ids can never address past the table (nn.Embedding
    # would raise; invalid ids here map to the nearest valid row).
    ids = jnp.clip(ids, 0, v - 1)
    budget = _vmem_budget_bytes()
    if gather_impl == "auto":
        # one-hot MXU gather needs the whole (V, E) table resident in VMEM and
        # does O(N*V) compare work -> only worth it for small vocabularies.
        use_onehot = (v <= 4096) and (2 * _tile_bytes(v, e) <= budget // 2)
        gather_impl = "onehot" if use_onehot else "rows"
    if gather_impl == "onehot":
        out = _gather_embed_onehot(ids, table, budget)
    else:
        out = _gather_embed_rows(ids, table)
    return out.reshape(bsz, seq, e)   # metadata-only reshape, no extra HBM pass


# ----------------------------------------------------------------------------
# Module-equivalent forward
# ----------------------------------------------------------------------------
@functools.partial(
    jax.jit,
    static_argnames=("n_qubits", "n_layers", "embedding_dim", "gather_impl"),
)
def quantum_embedding_forward(token_ids, quantum_params, w, b, *, n_qubits, n_layers,
                              embedding_dim, gather_impl="auto"):
    assert w.shape[0] == embedding_dim
    # 1. vocab-sized quantum feature table (plain JAX complex statevector sim)
    feats = quantum_feature_table(quantum_params, n_qubits, n_layers)   # (V, Q)
    # 2. vocab-tiled Pallas kernel: (V, E) embedding table = tanh(Linear(feats))
    table = pallas_embed_table(feats, w, b)                              # (V, E)
    # 3. hot path: Pallas gather of B*S rows, written at exact output shape
    return pallas_gather_embed(token_ids, table, gather_impl=gather_impl)


class OptimizedQuantumEmbeddingJAX:
    def __init__(self, vocab_size, embedding_dim, n_qubits=6, n_layers=3, seed=0):
        self.vocab_size = vocab_size
        self.embedding_dim = embedding_dim
        self.n_qubits = n_qubits
        self.n_layers = n_layers
        k0, k1, k2 = jax.random.split(jax.random.PRNGKey(seed), 3)
        # nn.Parameter(torch.randn(vocab, L*Q*2) * 0.1)
        self.quantum_params = 0.1 * jax.random.normal(
            k0, (vocab_size, n_layers * n_qubits * 2), dtype=jnp.float32
        )
        # nn.Linear(n_qubits, embedding_dim): U(-1/sqrt(Q), 1/sqrt(Q))
        bound = 1.0 / float(n_qubits) ** 0.5
        self.w = jax.random.uniform(
            k1, (embedding_dim, n_qubits), jnp.float32, -bound, bound
        )
        self.b = jax.random.uniform(k2, (embedding_dim,), jnp.float32, -bound, bound)

    def forward(self, token_ids):
        # Params are traced arguments (not jit-static constants), so parameter
        # updates take effect without retracing.
        return quantum_embedding_forward(
            token_ids, self.quantum_params, self.w, self.b,
            n_qubits=self.n_qubits, n_layers=self.n_layers,
            embedding_dim=self.embedding_dim,
        )


if __name__ == "__main__":
    vocab_size = 16
    embedding_dim = 32
    n_qubits = 6
    n_layers = 3
    batch, seq = 2, 8

    module = OptimizedQuantumEmbeddingJAX(vocab_size, embedding_dim, n_qubits, n_layers)

    key = jax.random.PRNGKey(0)
    k_ids, k_ids2 = jax.random.split(key)
    token_ids = jax.random.randint(k_ids, (batch, seq), 0, vocab_size, dtype=jnp.int32)

    # reference (plain JAX, f32-exact matmul so the comparison can be tight)
    feats = quantum_feature_table(module.quantum_params, n_qubits, n_layers)

    def reference(ids):
        g = feats[ids.reshape(-1)]
        lin = jnp.dot(g, module.w.T, precision=_HIGHEST) + module.b
        return jnp.tanh(lin).reshape(*ids.shape, embedding_dim)

    # 1) main forward (auto -> one-hot MXU gather at this vocab size)
    out = jax.block_until_ready(module.forward(token_ids))
    assert out.shape == (batch, seq, embedding_dim)
    err = float(jnp.max(jnp.abs(out - reference(token_ids))))
    assert err < 1e-4, f"onehot-gather path: max abs error vs reference = {err}"

    # 2) ragged token count -> exercises the masked partial output row block
    token_ids_ragged = jax.random.randint(k_ids2, (2, 5), 0, vocab_size, dtype=jnp.int32)
    out2 = jax.block_until_ready(module.forward(token_ids_ragged))
    assert out2.shape == (2, 5, embedding_dim)
    err2 = float(jnp.max(jnp.abs(out2 - reference(token_ids_ragged))))
    assert err2 < 1e-4, f"partial-block path: max abs error vs reference = {err2}"

    # 3) large-vocab escape hatch: scalar-prefetched true row gather
    out3 = quantum_embedding_forward(
        token_ids, module.quantum_params, module.w, module.b,
        n_qubits=n_qubits, n_layers=n_layers, embedding_dim=embedding_dim,
        gather_impl="rows",
    )
    out3 = jax.block_until_ready(out3)
    err3 = float(jnp.max(jnp.abs(out3 - reference(token_ids))))
    assert err3 < 1e-4, f"row-gather path: max abs error vs reference = {err3}"

    print("KERNEL_OK")
</pallas_src>

<mosaic_0001>
module attributes {stable_mosaic.version = 11 : i64} {
  func.func @_embed_table_kernel(%arg0: i32, %arg1: memref<16x6xf32, #tpu.memory_space<vmem>>, %arg2: memref<6x32xf32, #tpu.memory_space<vmem>>, %arg3: memref<1x32xf32, #tpu.memory_space<vmem>>, %arg4: memref<16x32xf32, #tpu.memory_space<vmem>>) attributes {dimension_semantics = [#tpu.dimension_semantics<parallel>], iteration_bounds = array<i64: 1>, scalar_prefetch = 0 : i64, scratch_operands = 0 : i64, tpu.core_type = #tpu.core_type<tc>, window_params = [{transform_indices = @transform_0, window_bounds = array<i64: 16, 6>}, {pipeline_mode = #tpu.pipeline_mode<synchronous>, transform_indices = @transform_1, window_bounds = array<i64: 6, 32>}, {pipeline_mode = #tpu.pipeline_mode<synchronous>, transform_indices = @transform_2, window_bounds = array<i64: 1, 32>}, {transform_indices = @transform_3, window_bounds = array<i64: 16, 32>}]} {
    %c0 = arith.constant 0 : index
    %c0_0 = arith.constant 0 : index
    %0 = vector.load %arg1[%c0, %c0_0] : memref<16x6xf32, #tpu.memory_space<vmem>>, vector<16x6xf32>
    %c0_1 = arith.constant 0 : index
    %c0_2 = arith.constant 0 : index
    %1 = vector.load %arg2[%c0_1, %c0_2] : memref<6x32xf32, #tpu.memory_space<vmem>>, vector<6x32xf32>
    %cst = arith.constant dense<0.000000e+00> : vector<16x32xf32>
    %2 = tpu.matmul %0, %1, %cst {dimension_numbers = #tpu.dot_dimension_numbers<[1], [0], [0], [1], [0, 0, 1, 1], [], []>, precision = #tpu.contract_precision<fp32>} : vector<16x6xf32>, vector<6x32xf32>, vector<16x32xf32> -> vector<16x32xf32>
    %c0_3 = arith.constant 0 : index
    %c0_4 = arith.constant 0 : index
    %3 = vector.load %arg3[%c0_3, %c0_4] : memref<1x32xf32, #tpu.memory_space<vmem>>, vector<1x32xf32>
    %4 = vector.broadcast %3 : vector<1x32xf32> to vector<16x32xf32>
    %5 = arith.addf %2, %4 : vector<16x32xf32>
    %6 = math.tanh %5 : vector<16x32xf32>
    %c0_5 = arith.constant 0 : index
    %c0_6 = arith.constant 0 : index
    %7 = vector.load %arg4[%c0_5, %c0_6] : memref<16x32xf32, #tpu.memory_space<vmem>>, vector<16x32xf32>
    tpu.vector_store %arg4[%c0_5, %c0_6], %6 {strides = array<i32>} : memref<16x32xf32, #tpu.memory_space<vmem>>, vector<16x32xf32>,
    return
  }
  func.func @transform_0(%arg0: i32) -> (i32, i32) {
    %c0_i32 = arith.constant 0 : i32
    %c0_i32_0 = arith.constant 0 : i32
    return %arg0, %c0_i32 : i32, i32
  }
  func.func @transform_1(%arg0: i32) -> (i32, i32) {
    %c0_i32 = arith.constant 0 : i32
    %c0_i32_0 = arith.constant 0 : i32
    %c0_i32_1 = arith.constant 0 : i32
    return %c0_i32, %c0_i32_0 : i32, i32
  }
  func.func @transform_2(%arg0: i32) -> (i32, i32) {
    %c0_i32 = arith.constant 0 : i32
    %c0_i32_0 = arith.constant 0 : i32
    %c0_i32_1 = arith.constant 0 : i32
    return %c0_i32, %c0_i32_0 : i32, i32
  }
  func.func @transform_3(%arg0: i32) -> (i32, i32) {
    %c0_i32 = arith.constant 0 : i32
    %c0_i32_0 = arith.constant 0 : i32
    return %arg0, %c0_i32 : i32, i32
  }
}

module attributes {stable_mosaic.version = 11 : i64} {
  func.func @_onehot_gather_kernel(%arg0: i32, %arg1: memref<8x1xi32, #tpu.memory_space<vmem>>, %arg2: memref<16x32xf32, #tpu.memory_space<vmem>>, %arg3: memref<8x32xf32, #tpu.memory_space<vmem>>) attributes {dimension_semantics = [#tpu.dimension_semantics<parallel>], iteration_bounds = array<i64: 2>, scalar_prefetch = 0 : i64, scratch_operands = 0 : i64, tpu.core_type = #tpu.core_type<tc>, window_params = [{transform_indices = @transform_0, window_bounds = array<i64: 8, 1>}, {pipeline_mode = #tpu.pipeline_mode<synchronous>, transform_indices = @transform_1, window_bounds = array<i64: 16, 32>}, {transform_indices = @transform_2, window_bounds = array<i64: 8, 32>}]} {
    %0 = tpu.iota {dimensions = array<i32: 1>} : vector<8x16xi32>
    %c0 = arith.constant 0 : index
    %c0_0 = arith.constant 0 : index
    %1 = vector.load %arg1[%c0, %c0_0] : memref<8x1xi32, #tpu.memory_space<vmem>>, vector<8x1xi32>
    %2 = vector.broadcast %1 : vector<8x1xi32> to vector<8x16xi32>
    %3 = arith.cmpi eq, %2, %0 : vector<8x16xi32>
    %4 = arith.extui %3 : vector<8x16xi1> to vector<8x16xi32>
    %5 = arith.sitofp %4 : vector<8x16xi32> to vector<8x16xf32>
    %c0_1 = arith.constant 0 : index
    %c0_2 = arith.constant 0 : index
    %6 = vector.load %arg2[%c0_1, %c0_2] : memref<16x32xf32, #tpu.memory_space<vmem>>, vector<16x32xf32>
    %cst = arith.constant dense<0.000000e+00> : vector<8x32xf32>
    %7 = tpu.matmul %5, %6, %cst {dimension_numbers = #tpu.dot_dimension_numbers<[1], [0], [0], [1], [0, 0, 1, 1], [], []>, precision = #tpu.contract_precision<fp32>} : vector<8x16xf32>, vector<16x32xf32>, vector<8x32xf32> -> vector<8x32xf32>
    %c0_3 = arith.constant 0 : index
    %c0_4 = arith.constant 0 : index
    %8 = vector.load %arg3[%c0_3, %c0_4] : memref<8x32xf32, #tpu.memory_space<vmem>>, vector<8x32xf32>
    tpu.vector_store %arg3[%c0_3, %c0_4], %7 {strides = array<i32>} : memref<8x32xf32, #tpu.memory_space<vmem>>, vector<8x32xf32>,
    return
  }
  func.func @transform_0(%arg0: i32) -> (i32, i32) {
    %c0_i32 = arith.constant 0 : i32
    %c0_i32_0 = arith.constant 0 : i32
    return %arg0, %c0_i32 : i32, i32
  }
  func.func @transform_1(%arg0: i32) -> (i32, i32) {
    %c0_i32 = arith.constant 0 : i32
    %c0_i32_0 = arith.constant 0 : i32
    %c0_i32_1 = arith.constant 0 : i32
    return %c0_i32, %c0_i32_0 : i32, i32
  }
  func.func @transform_2(%arg0: i32) -> (i32, i32) {
    %c0_i32 = arith.constant 0 : i32
    %c0_i32_0 = arith.constant 0 : i32
    return %arg0, %c0_i32 : i32, i32
  }
}

</mosaic_0001>

<llo_original>
// kernel: quantum_embedding_forward.2
$region0: #{quantum_embedding_forward.2}
  #allocation0 [shape = 'u32[]', space=smem, size = 0x4, offset = 0x4, fixed_abs, tag = 'smem constant byte address 0x4 - core index']
  #allocation1 [shape = 'u32[144,128]{1,0:T(1,128)}', space=vmem, size = 0x12000, scoped, tag = 'internal scratch']
  %s0 = inlined_call_operand.vmem [shape: f32[16,6], index: 0, kind: input, shape index: {}]
  %s1 = inlined_call_operand.vmem [shape: f32[6,32], index: 1, kind: input, shape index: {}]
  %s2 = inlined_call_operand.vmem [shape: f32[1,32], index: 2, kind: input, shape index: {}]
  %s3 = inlined_call_operand.vmem [shape: f32[16,32], index: 3, kind: output, shape index: {}]
  %s4 = sld [smem:[#allocation0]]
  $region22: #{quantum_embedding_forward.2} parent=0
    _
  %s6 = ssub.s32 1, %s4
  %s7 = scalar_select 0, %s6, %s4
  // Predicated region
  $region2: #{quantum_embedding_forward.2} parent=0 // pred_check
    _
  $region3: #{quantum_embedding_forward.2} parent=0 // pred_check_branch
    %9 = sbr.rel (0) target = $region5
  $region4: #{quantum_embedding_forward.2} parent=0 // pred_region
    _
  $region5: #{quantum_embedding_forward.2} parent=0 // pred_fallthru
    _
  // Predicated region
  $region6: #{quantum_embedding_forward.2} parent=0 // pred_check
    _
  $region7: #{quantum_embedding_forward.2} parent=0 // pred_check_branch
    %11 = sbr.rel (0) target = $region9
  $region8: #{quantum_embedding_forward.2} parent=0 // pred_region
    _
  $region9: #{quantum_embedding_forward.2} parent=0 // pred_fallthru
    _
  // Predicated region
  $region10: #{quantum_embedding_forward.2} parent=0 // pred_check
    _
  $region11: #{quantum_embedding_forward.2} parent=0 // pred_check_branch
    %13 = sbr.rel (0) target = $region13
  $region12: #{quantum_embedding_forward.2} parent=0 // pred_region
    _
  $region13: #{quantum_embedding_forward.2} parent=0 // pred_fallthru
    _
  %v14 = vld [vmem:[%s0] sm:$0xff]
  %v15 = vld [vmem:[%s0 + $0x8] sm:$0xff]
  %v16 = vld [vmem:[%s1] sm:$0x3f]
  %v17 = vld [vmem:[%s2] sm:$0x1]
  %v19 = vlaneseq
  %v20 = vshrl.u32 %v19, 7
  %v21 = vsub.s32 0, %v20
  %v22 = vrot.slane %v17, %v21
  %vm24 = vcmask 48128
  %v26 = vsel %vm24, %v14, 0
  %v29 = vsel %vm24, %v15, 0
  %vm31 = vcmask 1045504
  %v33 = vsel %vm31, %v16, 0
  %35 = vmatprep.subr.mxu0 0.0
  %v36 = vand.u32 %v33, 4294901760
  %37 = vmatpush1.msra.mxu0 %v36
  %38 = vmatprep.subr.mxu0 0.0
  %39 = vmatpush1.msra.mxu0 0.0
  %40 = vmatprep.subr.mxu0 0.0
  %41 = vmatpush1.msra.mxu0 0.0
  %42 = vmatprep.subr.mxu0 0.0
  %43 = vmatpush1.msra.mxu0 0.0
  %44 = vmatprep.subr.mxu0 0.0
  %45 = vmatpush1.msra.mxu0 0.0
  %46 = vmatprep.subr.mxu0 0.0
  %47 = vmatpush1.msra.mxu0 0.0
  %48 = vmatprep.subr.mxu0 0.0
  %49 = vmatpush1.msra.mxu0 0.0
  %50 = vmatprep.subr.mxu0 0.0
  %51 = vmatpush1.msra.mxu0 0.0
  %52 = vmatprep.subr.mxu0 0.0
  %53 = vmatpush1.msra.mxu0 0.0
  %54 = vmatprep.subr.mxu0 0.0
  %55 = vmatpush1.msra.mxu0 0.0
  %56 = vmatprep.subr.mxu0 0.0
  %57 = vmatpush1.msra.mxu0 0.0
  %58 = vmatprep.subr.mxu0 0.0
  %59 = vmatpush1.msra.mxu0 0.0
  %60 = vmatprep.subr.mxu0 0.0
  %61 = vmatpush1.msra.mxu0 0.0
  %62 = vmatprep.subr.mxu0 0.0
  %63 = vmatpush1.msra.mxu0 0.0
  %64 = vmatprep.subr.mxu0 0.0
  %65 = vmatpush1.msra.mxu0 0.0
  %66 = vmatprep.subr.mxu0 0.0
  %67 = vmatpush1.msra.mxu0 0.0
  %68 = vmatprep.subr.mxu0 0.0
  %69 = vmatpush1.msra.mxu0 0.0
  %70 = vmatprep.subr.mxu0 0.0
  %71 = vmatpush1.msra.mxu0 0.0
  %72 = vmatprep.subr.mxu0 0.0
  %73 = vmatpush1.msra.mxu0 0.0
  %74 = vmatprep.subr.mxu0 0.0
  %75 = vmatpush1.msra.mxu0 0.0
  %76 = vmatprep.subr.mxu0 0.0
  %77 = vmatpush1.msra.mxu0 0.0
  %78 = vmatprep.subr.mxu0 0.0
  %79 = vmatpush1.msra.mxu0 0.0
  %80 = vmatprep.subr.mxu0 0.0
  %81 = vmatpush1.msra.mxu0 0.0
  %82 = vmatprep.subr.mxu0 0.0
  %83 = vmatpush1.msra.mxu0 0.0
  %84 = vmatprep.subr.mxu0 0.0
  %85 = vmatpush1.msra.mxu0 0.0
  %86 = vmatprep.subr.mxu0 0.0
  %87 = vmatpush1.msra.mxu0 0.0
  %88 = vmatprep.subr.mxu0 0.0
  %89 = vmatpush1.msra.mxu0 0.0
  %90 = vmatprep.subr.mxu0 0.0
  %91 = vmatpush1.msra.mxu0 0.0
  %92 = vmatprep.subr.mxu0 0.0
  %93 = vmatpush1.msra.mxu0 0.0
  %94 = vmatprep.subr.mxu0 0.0
  %95 = vmatpush1.msra.mxu0 0.0
  %96 = vmatprep.subr.mxu0 0.0
  %97 = vmatpush1.msra.mxu0 0.0
  %98 = vmatprep.subr.mxu0 0.0
  %99 = vmatpush1.msra.mxu0 0.0
  %100 = vmatprep.mubr.f32.mxu0 0.0
  %v101 = vand.u32 %v26, 4294901760
  %v102 = vsub.f32 %v26, %v101
  %v103 = vand.u32 %v102, 4294901760
  %v104 = vsub.f32 %v102, %v103
  %v105 = vand.u32 %v104, 4294901760
  %106 = vmatmul.mubr.f32.gmra.mrb[0].mxu0 %v105
  %v107 = vpop.f32.mrb[0].mxu0
  %v108 = vadd.f32 %v22, %v107
  %v109 = vpop.f32.mrb[0].mxu0
  %110 = vmatprep.mubr.f32.mxu0 0.0
  %v111 = vand.u32 %v29, 4294901760
  %v112 = vsub.f32 %v29, %v111
  %v113 = vand.u32 %v112, 4294901760
  %v114 = vsub.f32 %v112, %v113
  %v115 = vand.u32 %v114, 4294901760
  %116 = vmatmul.mubr.f32.gmra.mrb[0].mxu0 %v115
  %v117 = vpop.f32.mrb[0].mxu0
  %v118 = vadd.f32 %v22, %v117
  %v119 = vpop.f32.mrb[0].mxu0
  %120 = vdwg.mxu0
  %121 = vmatprep.subr.mxu0 0.0
  %v122 = vand.u32 %v33, 4294901760
  %v123 = vsub.f32 %v33, %v122
  %v124 = vand.u32 %v123, 4294901760
  %v125 = vsub.f32 %v123, %v124
  %v126 = vand.u32 %v125, 4294901760
  %127 = vmatpush1.msra.mxu0 %v126
  %128 = vmatprep.subr.mxu0 0.0
  %129 = vmatpush1.msra.mxu0 0.0
  %130 = vmatprep.subr.mxu0 0.0
  %131 = vmatpush1.msra.mxu0 0.0
  %132 = vmatprep.subr.mxu0 0.0
  %133 = vmatpush1.msra.mxu0 0.0
  %134 = vmatprep.subr.mxu0 0.0
  %135 = vmatpush1.msra.mxu0 0.0
  %136 = vmatprep.subr.mxu0 0.0
  %137 = vmatpush1.msra.mxu0 0.0
  %138 = vmatprep.subr.mxu0 0.0
  %139 = vmatpush1.msra.mxu0 0.0
  %140 = vmatprep.subr.mxu0 0.0
  %141 = vmatpush1.msra.mxu0 0.0
  %142 = vmatprep.subr.mxu0 0.0
  %143 = vmatpush1.msra.mxu0 0.0
  %144 = vmatprep.subr.mxu0 0.0
  %145 = vmatpush1.msra.mxu0 0.0
  %146 = vmatprep.subr.mxu0 0.0
  %147 = vmatpush1.msra.mxu0 0.0
  %148 = vmatprep.subr.mxu0 0.0
  %149 = vmatpush1.msra.mxu0 0.0
  %150 = vmatprep.subr.mxu0 0.0
  %151 = vmatpush1.msra.mxu0 0.0
  %152 = vmatprep.subr.mxu0 0.0
  %153 = vmatpush1.msra.mxu0 0.0
  %154 = vmatprep.subr.mxu0 0.0
  %155 = vmatpush1.msra.mxu0 0.0
  %156 = vmatprep.subr.mxu0 0.0
  %157 = vmatpush1.msra.mxu0 0.0
  %158 = vmatprep.subr.mxu0 0.0
  %159 = vmatpush1.msra.mxu0 0.0
  %160 = vmatprep.subr.mxu0 0.0
  %161 = vmatpush1.msra.mxu0 0.0
  %162 = vmatprep.subr.mxu0 0.0
  %163 = vmatpush1.msra.mxu0 0.0
  %164 = vmatprep.subr.mxu0 0.0
  %165 = vmatpush1.msra.mxu0 0.0
  %166 = vmatprep.subr.mxu0 0.0
  %167 = vmatpush1.msra.mxu0 0.0
  %168 = vmatprep.subr.mxu0 0.0
  %169 = vmatpush1.msra.mxu0 0.0
  %170 = vmatprep.subr.mxu0 0.0
  %171 = vmatpush1.msra.mxu0 0.0
  %172 = vmatprep.subr.mxu0 0.0
  %173 = vmatpush1.msra.mxu0 0.0
  %174 = vmatprep.subr.mxu0 0.0
  %175 = vmatpush1.msra.mxu0 0.0
  %176 = vmatprep.subr.mxu0 0.0
  %177 = vmatpush1.msra.mxu0 0.0
  %178 = vmatprep.subr.mxu0 0.0
  %179 = vmatpush1.msra.mxu0 0.0
  %180 = vmatprep.subr.mxu0 0.0
  %181 = vmatpush1.msra.mxu0 0.0
  %182 = vmatprep.subr.mxu0 0.0
  %183 = vmatpush1.msra.mxu0 0.0
  %184 = vmatprep.subr.mxu0 0.0
  %185 = vmatpush1.msra.mxu0 0.0
  %186 = vmatprep.subr.mxu0 0.0
  %187 = vmatpush1.msra.mxu0 0.0
  %188 = vmatprep.subr.mxu0 0.0
  %189 = vmatpush1.msra.mxu0 0.0
  %190 = vmatprep.mubr.f32.mxu0 0.0
  %v191 = vand.u32 %v26, 4294901760
  %192 = vmatmul.mubr.f32.gmra.mrb[0].mxu0 %v191
  %v193 = vpop.f32.mrb[0].mxu0
  %v194 = vadd.f32 %v108, %v193
  %v195 = vpop.f32.mrb[0].mxu0
  %196 = vmatprep.mubr.f32.mxu0 0.0
  %v197 = vand.u32 %v29, 4294901760
  %198 = vmatmul.mubr.f32.gmra.mrb[0].mxu0 %v197
  %v199 = vpop.f32.mrb[0].mxu0
  %v200 = vadd.f32 %v118, %v199
  %v201 = vpop.f32.mrb[0].mxu0
  %202 = vdwg.mxu0
  %203 = vmatprep.subr.mxu0 0.0
  %v204 = vand.u32 %v33, 4294901760
  %v205 = vsub.f32 %v33, %v204
  %206 = vmatpush1.msra.mxu0 %v205
  %207 = vmatprep.subr.mxu0 0.0
  %208 = vmatpush1.msra.mxu0 0.0
  %209 = vmatprep.subr.mxu0 0.0
  %210 = vmatpush1.msra.mxu0 0.0
  %211 = vmatprep.subr.mxu0 0.0
  %212 = vmatpush1.msra.mxu0 0.0
  %213 = vmatprep.subr.mxu0 0.0
  %214 = vmatpush1.msra.mxu0 0.0
  %215 = vmatprep.subr.mxu0 0.0
  %216 = vmatpush1.msra.mxu0 0.0
  %217 = vmatprep.subr.mxu0 0.0
  %218 = vmatpush1.msra.mxu0 0.0
  %219 = vmatprep.subr.mxu0 0.0
  %220 = vmatpush1.msra.mxu0 0.0
  %221 = vmatprep.subr.mxu0 0.0
  %222 = vmatpush1.msra.mxu0 0.0
  %223 = vmatprep.subr.mxu0 0.0
  %224 = vmatpush1.msra.mxu0 0.0
  %225 = vmatprep.subr.mxu0 0.0
  %226 = vmatpush1.msra.mxu0 0.0
  %227 = vmatprep.subr.mxu0 0.0
  %228 = vmatpush1.msra.mxu0 0.0
  %229 = vmatprep.subr.mxu0 0.0
  %230 = vmatpush1.msra.mxu0 0.0
  %231 = vmatprep.subr.mxu0 0.0
  %232 = vmatpush1.msra.mxu0 0.0
  %233 = vmatprep.subr.mxu0 0.0
  %234 = vmatpush1.msra.mxu0 0.0
  %235 = vmatprep.subr.mxu0 0.0
  %236 = vmatpush1.msra.mxu0 0.0
  %237 = vmatprep.subr.mxu0 0.0
  %238 = vmatpush1.msra.mxu0 0.0
  %239 = vmatprep.subr.mxu0 0.0
  %240 = vmatpush1.msra.mxu0 0.0
  %241 = vmatprep.subr.mxu0 0.0
  %242 = vmatpush1.msra.mxu0 0.0
  %243 = vmatprep.subr.mxu0 0.0
  %244 = vmatpush1.msra.mxu0 0.0
  %245 = vmatprep.subr.mxu0 0.0
  %246 = vmatpush1.msra.mxu0 0.0
  %247 = vmatprep.subr.mxu0 0.0
  %248 = vmatpush1.msra.mxu0 0.0
  %249 = vmatprep.subr.mxu0 0.0
  %250 = vmatpush1.msra.mxu0 0.0
  %251 = vmatprep.subr.mxu0 0.0
  %252 = vmatpush1.msra.mxu0 0.0
  %253 = vmatprep.subr.mxu0 0.0
  %254 = vmatpush1.msra.mxu0 0.0
  %255 = vmatprep.subr.mxu0 0.0
  %256 = vmatpush1.msra.mxu0 0.0
  %257 = vmatprep.subr.mxu0 0.0
  %258 = vmatpush1.msra.mxu0 0.0
  %259 = vmatprep.subr.mxu0 0.0
  %260 = vmatpush1.msra.mxu0 0.0
  %261 = vmatprep.subr.mxu0 0.0
  %262 = vmatpush1.msra.mxu0 0.0
  %263 = vmatprep.subr.mxu0 0.0
  %264 = vmatpush1.msra.mxu0 0.0
  %265 = vmatprep.subr.mxu0 0.0
  %266 = vmatpush1.msra.mxu0 0.0
  %267 = vmatprep.subr.mxu0 0.0
  %268 = vmatpush1.msra.mxu0 0.0
  %269 = vmatprep.mubr.f32.mxu0 0.0
  %v270 = vand.u32 %v26, 4294901760
  %v271 = vsub.f32 %v26, %v270
  %272 = vmatmul.mubr.f32.gmra.mrb[0].mxu0 %v271
  %v273 = vpop.f32.mrb[0].mxu0
  %v274 = vadd.f32 %v194, %v273
  %v275 = vpop.f32.mrb[0].mxu0
  %276 = vmatprep.mubr.f32.mxu0 0.0
  %v277 = vand.u32 %v29, 4294901760
  %v278 = vsub.f32 %v29, %v277
  %279 = vmatmul.mubr.f32.gmra.mrb[0].mxu0 %v278
  %v280 = vpop.f32.mrb[0].mxu0
  %v281 = vadd.f32 %v200, %v280
  %v282 = vpop.f32.mrb[0].mxu0
  %283 = vdwg.mxu0
  %284 = vmatprep.subr.mxu0 0.0
  %v285 = vand.u32 %v33, 4294901760
  %286 = vmatpush1.msra.mxu0 %v285
  %287 = vmatprep.subr.mxu0 0.0
  %288 = vmatpush1.msra.mxu0 0.0
  %289 = vmatprep.subr.mxu0 0.0
  %290 = vmatpush1.msra.mxu0 0.0
  %291 = vmatprep.subr.mxu0 0.0
  %292 = vmatpush1.msra.mxu0 0.0
  %293 = vmatprep.subr.mxu0 0.0
  %294 = vmatpush1.msra.mxu0 0.0
  %295 = vmatprep.subr.mxu0 0.0
  %296 = vmatpush1.msra.mxu0 0.0
  %297 = vmatprep.subr.mxu0 0.0
  %298 = vmatpush1.msra.mxu0 0.0
  %299 = vmatprep.subr.mxu0 0.0
  %300 = vmatpush1.msra.mxu0 0.0
  %301 = vmatprep.subr.mxu0 0.0
  %302 = vmatpush1.msra.mxu0 0.0
  %303 = vmatprep.subr.mxu0 0.0
  %304 = vmatpush1.msra.mxu0 0.0
  %305 = vmatprep.subr.mxu0 0.0
  %306 = vmatpush1.msra.mxu0 0.0
  %307 = vmatprep.subr.mxu0 0.0
  %308 = vmatpush1.msra.mxu0 0.0
  %309 = vmatprep.subr.mxu0 0.0
  %310 = vmatpush1.msra.mxu0 0.0
  %311 = vmatprep.subr.mxu0 0.0
  %312 = vmatpush1.msra.mxu0 0.0
  %313 = vmatprep.subr.mxu0 0.0
  %314 = vmatpush1.msra.mxu0 0.0
  %315 = vmatprep.subr.mxu0 0.0
  %316 = vmatpush1.msra.mxu0 0.0
  %317 = vmatprep.subr.mxu0 0.0
  %318 = vmatpush1.msra.mxu0 0.0
  %319 = vmatprep.subr.mxu0 0.0
  %320 = vmatpush1.msra.mxu0 0.0
  %321 = vmatprep.subr.mxu0 0.0
  %322 = vmatpush1.msra.mxu0 0.0
  %323 = vmatprep.subr.mxu0 0.0
  %324 = vmatpush1.msra.mxu0 0.0
  %325 = vmatprep.subr.mxu0 0.0
  %326 = vmatpush1.msra.mxu0 0.0
  %327 = vmatprep.subr.mxu0 0.0
  %328 = vmatpush1.msra.mxu0 0.0
  %329 = vmatprep.subr.mxu0 0.0
  %330 = vmatpush1.msra.mxu0 0.0
  %331 = vmatprep.subr.mxu0 0.0
  %332 = vmatpush1.msra.mxu0 0.0
  %333 = vmatprep.subr.mxu0 0.0
  %334 = vmatpush1.msra.mxu0 0.0
  %335 = vmatprep.subr.mxu0 0.0
  %336 = vmatpush1.msra.mxu0 0.0
  %337 = vmatprep.subr.mxu0 0.0
  %338 = vmatpush1.msra.mxu0 0.0
  %339 = vmatprep.subr.mxu0 0.0
  %340 = vmatpush1.msra.mxu0 0.0
  %341 = vmatprep.subr.mxu0 0.0
  %342 = vmatpush1.msra.mxu0 0.0
  %343 = vmatprep.subr.mxu0 0.0
  %344 = vmatpush1.msra.mxu0 0.0
  %345 = vmatprep.subr.mxu0 0.0
  %346 = vmatpush1.msra.mxu0 0.0
  %347 = vmatprep.subr.mxu0 0.0
  %348 = vmatpush1.msra.mxu0 0.0
  %349 = vmatprep.mubr.f32.mxu0 0.0
  %v350 = vand.u32 %v26, 4294901760
  %v351 = vsub.f32 %v26, %v350
  %v352 = vand.u32 %v351, 4294901760
  %353 = vmatmul.mubr.f32.gmra.mrb[0].mxu0 %v352
  %v354 = vpop.f32.mrb[0].mxu0
  %v355 = vadd.f32 %v274, %v354
  %v356 = vpop.f32.mrb[0].mxu0
  %357 = vmatprep.mubr.f32.mxu0 0.0
  %v358 = vand.u32 %v29, 4294901760
  %v359 = vsub.f32 %v29, %v358
  %v360 = vand.u32 %v359, 4294901760
  %361 = vmatmul.mubr.f32.gmra.mrb[0].mxu0 %v360
  %v362 = vpop.f32.mrb[0].mxu0
  %v363 = vadd.f32 %v281, %v362
  %v364 = vpop.f32.mrb[0].mxu0
  %365 = vdwg.mxu0
  %366 = vmatprep.subr.mxu0 0.0
  %v367 = vand.u32 %v33, 4294901760
  %v368 = vsub.f32 %v33, %v367
  %v369 = vand.u32 %v368, 4294901760
  %370 = vmatpush1.msra.mxu0 %v369
  %371 = vmatprep.subr.mxu0 0.0
  %372 = vmatpush1.msra.mxu0 0.0
  %373 = vmatprep.subr.mxu0 0.0
  %374 = vmatpush1.msra.mxu0 0.0
  %375 = vmatprep.subr.mxu0 0.0
  %376 = vmatpush1.msra.mxu0 0.0
  %377 = vmatprep.subr.mxu0 0.0
  %378 = vmatpush1.msra.mxu0 0.0
  %379 = vmatprep.subr.mxu0 0.0
  %380 = vmatpush1.msra.mxu0 0.0
  %381 = vmatprep.subr.mxu0 0.0
  %382 = vmatpush1.msra.mxu0 0.0
  %383 = vmatprep.subr.mxu0 0.0
  %384 = vmatpush1.msra.mxu0 0.0
  %385 = vmatprep.subr.mxu0 0.0
  %386 = vmatpush1.msra.mxu0 0.0
  %387 = vmatprep.subr.mxu0 0.0
  %388 = vmatpush1.msra.mxu0 0.0
  %389 = vmatprep.subr.mxu0 0.0
  %390 = vmatpush1.msra.mxu0 0.0
  %391 = vmatprep.subr.mxu0 0.0
  %392 = vmatpush1.msra.mxu0 0.0
  %393 = vmatprep.subr.mxu0 0.0
  %394 = vmatpush1.msra.mxu0 0.0
  %395 = vmatprep.subr.mxu0 0.0
  %396 = vmatpush1.msra.mxu0 0.0
  %397 = vmatprep.subr.mxu0 0.0
  %398 = vmatpush1.msra.mxu0 0.0
  %399 = vmatprep.subr.mxu0 0.0
  %400 = vmatpush1.msra.mxu0 0.0
  %401 = vmatprep.subr.mxu0 0.0
  %402 = vmatpush1.msra.mxu0 0.0
  %403 = vmatprep.subr.mxu0 0.0
  %404 = vmatpush1.msra.mxu0 0.0
  %405 = vmatprep.subr.mxu0 0.0
  %406 = vmatpush1.msra.mxu0 0.0
  %407 = vmatprep.subr.mxu0 0.0
  %408 = vmatpush1.msra.mxu0 0.0
  %409 = vmatprep.subr.mxu0 0.0
  %410 = vmatpush1.msra.mxu0 0.0
  %411 = vmatprep.subr.mxu0 0.0
  %412 = vmatpush1.msra.mxu0 0.0
  %413 = vmatprep.subr.mxu0 0.0
  %414 = vmatpush1.msra.mxu0 0.0
  %415 = vmatprep.subr.mxu0 0.0
  %416 = vmatpush1.msra.mxu0 0.0
  %417 = vmatprep.subr.mxu0 0.0
  %418 = vmatpush1.msra.mxu0 0.0
  %419 = vmatprep.subr.mxu0 0.0
  %420 = vmatpush1.msra.mxu0 0.0
  %421 = vmatprep.subr.mxu0 0.0
  %422 = vmatpush1.msra.mxu0 0.0
  %423 = vmatprep.subr.mxu0 0.0
  %424 = vmatpush1.msra.mxu0 0.0
  %425 = vmatprep.subr.mxu0 0.0
  %426 = vmatpush1.msra.mxu0 0.0
  %427 = vmatprep.subr.mxu0 0.0
  %428 = vmatpush1.msra.mxu0 0.0
  %429 = vmatprep.subr.mxu0 0.0
  %430 = vmatpush1.msra.mxu0 0.0
  %431 = vmatprep.subr.mxu0 0.0
  %432 = vmatpush1.msra.mxu0 0.0
  %433 = vmatprep.mubr.f32.mxu0 0.0
  %v434 = vand.u32 %v26, 4294901760
  %435 = vmatmul.mubr.f32.gmra.mrb[0].mxu0 %v434
  %v436 = vpop.f32.mrb[0].mxu0
  %v437 = vadd.f32 %v355, %v436
  %v438 = vpop.f32.mrb[0].mxu0
  %439 = vmatprep.mubr.f32.mxu0 0.0
  %v440 = vand.u32 %v29, 4294901760
  %441 = vmatmul.mubr.f32.gmra.mrb[0].mxu0 %v440
  %v442 = vpop.f32.mrb[0].mxu0
  %v443 = vadd.f32 %v363, %v442
  %v444 = vpop.f32.mrb[0].mxu0
  %445 = vdwg.mxu0
  %446 = vmatprep.subr.mxu0 0.0
  %v447 = vand.u32 %v33, 4294901760
  %448 = vmatpush1.msra.mxu0 %v447
  %449 = vmatprep.subr.mxu0 0.0
  %450 = vmatpush1.msra.mxu0 0.0
  %451 = vmatprep.subr.mxu0 0.0
  %452 = vmatpush1.msra.mxu0 0.0
  %453 = vmatprep.subr.mxu0 0.0
  %454 = vmatpush1.msra.mxu0 0.0
  %455 = vmatprep.subr.mxu0 0.0
  %456 = vmatpush1.msra.mxu0 0.0
  %457 = vmatprep.subr.mxu0 0.0
  %458 = vmatpush1.msra.mxu0 0.0
  %459 = vmatprep.subr.mxu0 0.0
  %460 = vmatpush1.msra.mxu0 0.0
  %461 = vmatprep.subr.mxu0 0.0
  %462 = vmatpush1.msra.mxu0 0.0
  %463 = vmatprep.subr.mxu0 0.0
  %464 = vmatpush1.msra.mxu0 0.0
  %465 = vmatprep.subr.mxu0 0.0
  %466 = vmatpush1.msra.mxu0 0.0
  %467 = vmatprep.subr.mxu0 0.0
  %468 = vmatpush1.msra.mxu0 0.0
  %469 = vmatprep.subr.mxu0 0.0
  %470 = vmatpush1.msra.mxu0 0.0
  %471 = vmatprep.subr.mxu0 0.0
  %472 = vmatpush1.msra.mxu0 0.0
  %473 = vmatprep.subr.mxu0 0.0
  %474 = vmatpush1.msra.mxu0 0.0
  %475 = vmatprep.subr.mxu0 0.0
  %476 = vmatpush1.msra.mxu0 0.0
  %477 = vmatprep.subr.mxu0 0.0
  %478 = vmatpush1.msra.mxu0 0.0
  %479 = vmatprep.subr.mxu0 0.0
  %480 = vmatpush1.msra.mxu0 0.0
  %481 = vmatprep.subr.mxu0 0.0
  %482 = vmatpush1.msra.mxu0 0.0
  %483 = vmatprep.subr.mxu0 0.0
  %484 = vmatpush1.msra.mxu0 0.0
  %485 = vmatprep.subr.mxu0 0.0
  %486 = vmatpush1.msra.mxu0 0.0
  %487 = vmatprep.subr.mxu0 0.0
  %488 = vmatpush1.msra.mxu0 0.0
  %489 = vmatprep.subr.mxu0 0.0
  %490 = vmatpush1.msra.mxu0 0.0
  %491 = vmatprep.subr.mxu0 0.0
  %492 = vmatpush1.msra.mxu0 0.0
  %493 = vmatprep.subr.mxu0 0.0
  %494 = vmatpush1.msra.mxu0 0.0
  %495 = vmatprep.subr.mxu0 0.0
  %496 = vmatpush1.msra.mxu0 0.0
  %497 = vmatprep.subr.mxu0 0.0
  %498 = vmatpush1.msra.mxu0 0.0
  %499 = vmatprep.subr.mxu0 0.0
  %500 = vmatpush1.msra.mxu0 0.0
  %501 = vmatprep.subr.mxu0 0.0
  %502 = vmatpush1.msra.mxu0 0.0
  %503 = vmatprep.subr.mxu0 0.0
  %504 = vmatpush1.msra.mxu0 0.0
  %505 = vmatprep.subr.mxu0 0.0
  %506 = vmatpush1.msra.mxu0 0.0
  %507 = vmatprep.subr.mxu0 0.0
  %508 = vmatpush1.msra.mxu0 0.0
  %509 = vmatprep.subr.mxu0 0.0
  %510 = vmatpush1.msra.mxu0 0.0
  %511 = vmatprep.mubr.f32.mxu0 0.0
  %v512 = vand.u32 %v26, 4294901760
  %513 = vmatmul.mubr.f32.gmra.mrb[0].mxu0 %v512
  %v514 = vpop.f32.mrb[0].mxu0
  %v515 = vadd.f32 %v437, %v514
  %v516 = vpop.f32.mrb[0].mxu0
  %517 = vmatprep.mubr.f32.mxu0 0.0
  %v518 = vand.u32 %v29, 4294901760
  %519 = vmatmul.mubr.f32.gmra.mrb[0].mxu0 %v518
  %v520 = vpop.f32.mrb[0].mxu0
  %v521 = vadd.f32 %v443, %v520
  %v522 = vpop.f32.mrb[0].mxu0
  %523 = vdwg.mxu0
  %v524 = vtanh.pop %v515
  %v525 = vtanh.pop %v521
  %vm526 = vcmask 261120
  %527 = vst.msk [vmem:[%s3] sm:$0xff] %vm526, %v524
  %528 = vst.msk [vmem:[%s3 + $0x8] sm:$0xff] %vm526, %v525
  // Predicated region
  $region14: #{quantum_embedding_forward.2} parent=0 // pred_check
    _
  $region15: #{quantum_embedding_forward.2} parent=0 // pred_check_branch
    %530 = sbr.rel (0) target = $region17
  $region16: #{quantum_embedding_forward.2} parent=0 // pred_region
    _
  $region17: #{quantum_embedding_forward.2} parent=0 // pred_fallthru
    _
  // Predicated region
  $region18: #{quantum_embedding_forward.2} parent=0 // pred_check
    _
  $region19: #{quantum_embedding_forward.2} parent=0 // pred_check_branch
    %532 = sbr.rel (0) target = $region21
  $region20: #{quantum_embedding_forward.2} parent=0 // pred_region
    _
  $region21: #{quantum_embedding_forward.2} parent=0 // pred_fallthru
    _

// kernel: quantum_embedding_forward.3
$region0: #{quantum_embedding_forward.3}
  #allocation0 [shape = 'u32[]', space=smem, size = 0x4, offset = 0x4, fixed_abs, tag = 'smem constant byte address 0x4 - core index']
  #allocation1 [shape = 'u32[144,128]{1,0:T(1,128)}', space=vmem, size = 0x12000, scoped, tag = 'internal scratch']
  %s0 = inlined_call_operand.vmem [shape: s32[16,1], index: 0, kind: input, shape index: {}]
  %s1 = inlined_call_operand.vmem [shape: f32[16,32], index: 1, kind: input, shape index: {}]
  %s2 = inlined_call_operand.hbm [shape: f32[16,32], index: 2, kind: output, shape index: {}]
  %s3 = sld [smem:[#allocation0]]
  $region41: #{quantum_embedding_forward.3} parent=0
    _
  %s5 = ssub.s32 1, %s3
  %s6 = scalar_select 0, %s5, %s3
  $region1: #{quantum_embedding_forward.3} parent=0
    #allocation2 [shape = 'u8[8192]{0}', space=vmem, size = 0x2000, scoped, tag = 'output window, operand 0']
    #allocation3 [shape = 's32[2]{0}', space=sflag, size = 0x8, scoped, tag = 'scoped memory for quantum_embedding_forward.3']
    %7 = vsyncpa [#allocation3], 0
    %s8 = scalar_lea.sflag [#allocation3], 1
    %9 = vsyncpa %s8, 0
    loop: start=0, step=1, limit=4
    $region2: #{quantum_embedding_forward.3} parent=1 // loop_pre_header
      _
    $region3: #{quantum_embedding_forward.3} parent=1 // loop_header
      %s11 = sphi 0, %s15
      %p12 = scmp.ge.s32.totalorder %s11, 4
      %s21 = sphi 0, %s23
      %s24 = sphi 0, %s21
      %s25 = sphi 0, %s24
      %s41 = sphi 0, %s25
      %s45 = sphi 0, %s45
      %s47 = sphi 0, %s45
      %s48 = sphi 0, %s47
      %s62 = sphi 0, %s48
      %s68 = sphi 0, %s70
      %s71 = sphi 0, %s68
      %s72 = sphi 0, %s71
      %s88 = sphi 0, %s72
    $region4: #{quantum_embedding_forward.3} parent=1 // loop_header_branch
      %14 = sbr.rel (%p12) target = $region8
    $region5: #{quantum_embedding_forward.3} parent=1 // loop_body
      %s16 = ssub.s32 %s11, 1
      %s17 = ssub.s32 %s11, 2
      %s18 = sadd.s32 %s11, 1
      %s19 = ssub.s32 %s11, %s18
      %p20 = scmp.eq.s32.totalorder %s19, 0
      %s22 = sadd.s32 %s21, 1
      %s23 = scalar_select %p20, %s21, %s22
      %p26 = pneg %p20
      %p27 = scmp.eq.s32.totalorder %s11, 1
      %p28 = por %p26, %p27
      %p29 = scmp.ne.s32.totalorder %s21, %s24
      %p30 = scmp.eq.s32.totalorder %s11, 0
      %p31 = por %p29, %p30
      %p32 = scmp.ne.s32.totalorder %s21, %s24
      %p33 = scmp.eq.s32.totalorder %s16, 1
      %p34 = por %p32, %p33
      %p35 = scmp.ne.s32.totalorder %s24, %s25
      %p36 = scmp.eq.s32.totalorder %s16, 0
      %p37 = por %p35, %p36
      %p38 = scmp.ne.s32.totalorder %s24, %s25
      %p39 = scmp.eq.s32.totalorder %s17, 1
      %p40 = por %p38, %p39
      %p42 = scmp.ne.s32.totalorder %s25, %s41
      %p43 = scmp.eq.s32.totalorder %s17, 0
      %p44 = por %p42, %p43
      %s46 = sadd.s32 %s45, 1
      %p49 = scmp.eq.s32.totalorder %s11, 1
      %p50 = scmp.ne.s32.totalorder %s45, %s47
      %p51 = scmp.eq.s32.totalorder %s11, 0
      %p52 = por %p50, %p51
      %p53 = scmp.ne.s32.totalorder %s45, %s47
      %p54 = scmp.eq.s32.totalorder %s16, 1
      %p55 = por %p53, %p54
      %p56 = scmp.ne.s32.totalorder %s47, %s48
      %p57 = scmp.eq.s32.totalorder %s16, 0
      %p58 = por %p56, %p57
      %p59 = scmp.ne.s32.totalorder %s47, %s48
      %p60 = scmp.eq.s32.totalorder %s17, 1
      %p61 = por %p59, %p60
      %p63 = scmp.ne.s32.totalorder %s48, %s62
      %p64 = scmp.eq.s32.totalorder %s17, 0
      %p65 = por %p63, %p64
      %s66 = ssub.s32 %s11, %s18
      %p67 = scmp.eq.s32.totalorder %s66, 0
      %s69 = sadd.s32 %s68, 1
      %s70 = scalar_select %p67, %s68, %s69
      %p73 = pneg %p67
      %p74 = scmp.eq.s32.totalorder %s11, 1
      %p75 = por %p73, %p74
      %p76 = scmp.ne.s32.totalorder %s68, %s71
      %p77 = scmp.eq.s32.totalorder %s11, 0
      %p78 = por %p76, %p77
      %p79 = scmp.ne.s32.totalorder %s68, %s71
      %p80 = scmp.eq.s32.totalorder %s16, 1
      %p81 = por %p79, %p80
      %p82 = scmp.ne.s32.totalorder %s71, %s72
      %p83 = scmp.eq.s32.totalorder %s16, 0
      %p84 = por %p82, %p83
      %p85 = scmp.ne.s32.totalorder %s71, %s72
      %p86 = scmp.eq.s32.totalorder %s17, 1
      %p87 = por %p85, %p86
      %p89 = scmp.ne.s32.totalorder %s72, %s88
      %p90 = scmp.eq.s32.totalorder %s17, 0
      %p91 = por %p89, %p90
      %p92 = scmp.le.s32.totalorder 1, %s11
      %p93 = scmp.lt.s32.totalorder %s11, 3
      %p94 = pnand %p92, %p93
      %p95 = pneg %p94
      // Predicated region
      $region9: #{quantum_embedding_forward.3} parent=5 // pred_check
        _
      $region10: #{quantum_embedding_forward.3} parent=5 // pred_check_branch
        %97 = sbr.rel (%p94) target = $region12
      $region11: #{quantum_embedding_forward.3} parent=5 // pred_region
        %s98 = ssub.s32 %s11, 1
        // Predicated region
        $region13: #{quantum_embedding_forward.3} parent=11 // pred_check
          %p99 = pneg %p58
        $region14: #{quantum_embedding_forward.3} parent=11 // pred_check_branch
          %101 = sbr.rel (%p99) target = $region16
        $region15: #{quantum_embedding_forward.3} parent=11 // pred_region
          _
        $region16: #{quantum_embedding_forward.3} parent=11 // pred_fallthru
          _
      $region12: #{quantum_embedding_forward.3} parent=5 // pred_fallthru
        _
      %p102 = scmp.lt.s32.totalorder %s11, 2
      // Predicated region
      $region17: #{quantum_embedding_forward.3} parent=5 // pred_check
        %p103 = pneg %p102
      $region18: #{quantum_embedding_forward.3} parent=5 // pred_check_branch
        %105 = sbr.rel (%p103) target = $region20
      $region19: #{quantum_embedding_forward.3} parent=5 // pred_region
        // Predicated region
        $region21: #{quantum_embedding_forward.3} parent=19 // pred_check
          %p106 = pneg %p31
        $region22: #{quantum_embedding_forward.3} parent=19 // pred_check_branch
          %108 = sbr.rel (%p106) target = $region24
        $region23: #{quantum_embedding_forward.3} parent=19 // pred_region
          %p109 = scmp.lt.s32.totalorder %s11, 1
          %s110 = scalar_select %p109, %s11, 1
          %s111 = smul.addr %s110, 8
          %s112 = scalar_lea.vmem %s0, %s111
        $region24: #{quantum_embedding_forward.3} parent=19 // pred_fallthru
          _
      $region20: #{quantum_embedding_forward.3} parent=5 // pred_fallthru
        _
      %p113 = scmp.le.s32.totalorder 1, %s11
      %p114 = scmp.lt.s32.totalorder %s11, 3
      %p115 = pnand %p113, %p114
      %p116 = pneg %p115
      // Predicated region
      $region25: #{quantum_embedding_forward.3} parent=5 // pred_check
        _
      $region26: #{quantum_embedding_forward.3} parent=5 // pred_check_branch
        %118 = sbr.rel (%p115) target = $region28
      $region27: #{quantum_embedding_forward.3} parent=5 // pred_region
        %s119 = ssub.s32 %s11, 1
        %p120 = scmp.lt.s32.totalorder %s16, 1
        %s121 = scalar_select %p120, %s16, 1
        %s122 = smul.addr %s121, 8
        %s123 = scalar_lea.vmem %s0, %s122
        %p124 = pneg %p37
        %p125 = pneg %p34
        %p126 = pneg %p58
        %p127 = pneg %p55
        %p128 = pneg %p84
        %p129 = pneg %p81
        %s130 = sand.u32 %s71, 1
        %s131 = scalar_lea.sflag [#allocation3], %s130
        %s132 = sand.u32 %s71, 1
        %s133 = smul.addr %s132, 8
        %s134 = scalar_lea.vmem [#allocation2], %s133
        %p135 = scmp.lt.s32.totalorder %s16, 1
        %s136 = scalar_select %p135, %s16, 1
        %s137 = smul.addr %s136, 8
        %s138 = scalar_lea.vmem %s0, %s137
        %v139 = vlaneseq
        %v140 = vand.u32 %v139, 127
        %v141 = vld [vmem:[%s138] sm:$0xff]
        %142 = vset.pattern.permute.xlu0 0
        %143 = vperm.xlu0 %142, %v141
        %v144 = vpop.permute.xlu0 %143
        %vm145 = vcmp.eq.s32.totalorder %v144, %v140
        %v146 = vsel %vm145, 1, 0
        %v147 = vcvt.s32.f32 %v146
        %v148 = vld [vmem:[%s1] sm:$0xff]
        %v149 = vld [vmem:[%s1 + $0x8] sm:$0xff]
        %vm150 = vcmask 130048
        %v152 = vsel %vm150, %v147, 0
        %154 = vmatprep.subr.mxu0 0.0
        %v155 = vand.u32 %v148, 4294901760
        %156 = vmatpush1.msra.mxu0 %v155
        %157 = vmatprep.subr.mxu0 0.0
        %v158 = vand.u32 %v149, 4294901760
        %159 = vmatpush1.msra.mxu0 %v158
        %160 = vmatprep.subr.mxu0 0.0
        %161 = vmatpush1.msra.mxu0 0.0
        %162 = vmatprep.subr.mxu0 0.0
        %163 = vmatpush1.msra.mxu0 0.0
        %164 = vmatprep.subr.mxu0 0.0
        %165 = vmatpush1.msra.mxu0 0.0
        %166 = vmatprep.subr.mxu0 0.0
        %167 = vmatpush1.msra.mxu0 0.0
        %168 = vmatprep.subr.mxu0 0.0
        %169 = vmatpush1.msra.mxu0 0.0
        %170 = vmatprep.subr.mxu0 0.0
        %171 = vmatpush1.msra.mxu0 0.0
        %172 = vmatprep.subr.mxu0 0.0
        %173 = vmatpush1.msra.mxu0 0.0
        %174 = vmatprep.subr.mxu0 0.0
        %175 = vmatpush1.msra.mxu0 0.0
        %176 = vmatprep.subr.mxu0 0.0
        %177 = vmatpush1.msra.mxu0 0.0
        %178 = vmatprep.subr.mxu0 0.0
        %179 = vmatpush1.msra.mxu0 0.0
        %180 = vmatprep.subr.mxu0 0.0
        %181 = vmatpush1.msra.mxu0 0.0
        %182 = vmatprep.subr.mxu0 0.0
        %183 = vmatpush1.msra.mxu0 0.0
        %184 = vmatprep.subr.mxu0 0.0
        %185 = vmatpush1.msra.mxu0 0.0
        %186 = vmatprep.subr.mxu0 0.0
        %187 = vmatpush1.msra.mxu0 0.0
        %188 = vmatprep.subr.mxu0 0.0
        %189 = vmatpush1.msra.mxu0 0.0
        %190 = vmatprep.subr.mxu0 0.0
        %191 = vmatpush1.msra.mxu0 0.0
        %192 = vmatprep.subr.mxu0 0.0
        %193 = vmatpush1.msra.mxu0 0.0
        %194 = vmatprep.subr.mxu0 0.0
        %195 = vmatpush1.msra.mxu0 0.0
        %196 = vmatprep.subr.mxu0 0.0
        %197 = vmatpush1.msra.mxu0 0.0
        %198 = vmatprep.subr.mxu0 0.0
        %199 = vmatpush1.msra.mxu0 0.0
        %200 = vmatprep.subr.mxu0 0.0
        %201 = vmatpush1.msra.mxu0 0.0
        %202 = vmatprep.subr.mxu0 0.0
        %203 = vmatpush1.msra.mxu0 0.0
        %204 = vmatprep.subr.mxu0 0.0
        %205 = vmatpush1.msra.mxu0 0.0
        %206 = vmatprep.subr.mxu0 0.0
        %207 = vmatpush1.msra.mxu0 0.0
        %208 = vmatprep.subr.mxu0 0.0
        %209 = vmatpush1.msra.mxu0 0.0
        %210 = vmatprep.subr.mxu0 0.0
        %211 = vmatpush1.msra.mxu0 0.0
        %212 = vmatprep.subr.mxu0 0.0
        %213 = vmatpush1.msra.mxu0 0.0
        %214 = vmatprep.subr.mxu0 0.0
        %215 = vmatpush1.msra.mxu0 0.0
        %216 = vmatprep.subr.mxu0 0.0
        %217 = vmatpush1.msra.mxu0 0.0
        %218 = vmatprep.subr.mxu0 0.0
        %219 = vmatpush1.msra.mxu0 0.0
        %220 = vmatprep.mubr.f32.mxu0 0.0
        %v221 = vand.u32 %v152, 4294901760
        %v222 = vsub.f32 %v152, %v221
        %v223 = vand.u32 %v222, 4294901760
        %v224 = vsub.f32 %v222, %v223
        %v225 = vand.u32 %v224, 4294901760
        %226 = vmatmul.mubr.f32.gmra.mrb[0].mxu0 %v225
        %v227 = vpop.f32.mrb[0].mxu0
        %v228 = vadd.f32 0.0, %v227
        %v229 = vpop.f32.mrb[0].mxu0
        %230 = vdwg.mxu0
        %231 = vmatprep.subr.mxu0 0.0
        %v232 = vand.u32 %v148, 4294901760
        %v233 = vsub.f32 %v148, %v232
        %v234 = vand.u32 %v233, 4294901760
        %v235 = vsub.f32 %v233, %v234
        %v236 = vand.u32 %v235, 4294901760
        %237 = vmatpush1.msra.mxu0 %v236
        %238 = vmatprep.subr.mxu0 0.0
        %v239 = vand.u32 %v149, 4294901760
        %v240 = vsub.f32 %v149, %v239
        %v241 = vand.u32 %v240, 4294901760
        %v242 = vsub.f32 %v240, %v241
        %v243 = vand.u32 %v242, 4294901760
        %244 = vmatpush1.msra.mxu0 %v243
        %245 = vmatprep.subr.mxu0 0.0
        %246 = vmatpush1.msra.mxu0 0.0
        %247 = vmatprep.subr.mxu0 0.0
        %248 = vmatpush1.msra.mxu0 0.0
        %249 = vmatprep.subr.mxu0 0.0
        %250 = vmatpush1.msra.mxu0 0.0
        %251 = vmatprep.subr.mxu0 0.0
        %252 = vmatpush1.msra.mxu0 0.0
        %253 = vmatprep.subr.mxu0 0.0
        %254 = vmatpush1.msra.mxu0 0.0
        %255 = vmatprep.subr.mxu0 0.0
        %256 = vmatpush1.msra.mxu0 0.0
        %257 = vmatprep.subr.mxu0 0.0
        %258 = vmatpush1.msra.mxu0 0.0
        %259 = vmatprep.subr.mxu0 0.0
        %260 = vmatpush1.msra.mxu0 0.0
        %261 = vmatprep.subr.mxu0 0.0
        %262 = vmatpush1.msra.mxu0 0.0
        %263 = vmatprep.subr.mxu0 0.0
        %264 = vmatpush1.msra.mxu0 0.0
        %265 = vmatprep.subr.mxu0 0.0
        %266 = vmatpush1.msra.mxu0 0.0
        %267 = vmatprep.subr.mxu0 0.0
        %268 = vmatpush1.msra.mxu0 0.0
        %269 = vmatprep.subr.mxu0 0.0
        %270 = vmatpush1.msra.mxu0 0.0
        %271 = vmatprep.subr.mxu0 0.0
        %272 = vmatpush1.msra.mxu0 0.0
        %273 = vmatprep.subr.mxu0 0.0
        %274 = vmatpush1.msra.mxu0 0.0
        %275 = vmatprep.subr.mxu0 0.0
        %276 = vmatpush1.msra.mxu0 0.0
        %277 = vmatprep.subr.mxu0 0.0
        %278 = vmatpush1.msra.mxu0 0.0
        %279 = vmatprep.subr.mxu0 0.0
        %280 = vmatpush1.msra.mxu0 0.0
        %281 = vmatprep.subr.mxu0 0.0
        %282 = vmatpush1.msra.mxu0 0.0
        %283 = vmatprep.subr.mxu0 0.0
        %284 = vmatpush1.msra.mxu0 0.0
        %285 = vmatprep.subr.mxu0 0.0
        %286 = vmatpush1.msra.mxu0 0.0
        %287 = vmatprep.subr.mxu0 0.0
        %288 = vmatpush1.msra.mxu0 0.0
        %289 = vmatprep.subr.mxu0 0.0
        %290 = vmatpush1.msra.mxu0 0.0
        %291 = vmatprep.subr.mxu0 0.0
        %292 = vmatpush1.msra.mxu0 0.0
        %293 = vmatprep.subr.mxu0 0.0
        %294 = vmatpush1.msra.mxu0 0.0
        %295 = vmatprep.subr.mxu0 0.0
        %296 = vmatpush1.msra.mxu0 0.0
        %297 = vmatprep.subr.mxu0 0.0
        %298 = vmatpush1.msra.mxu0 0.0
        %299 = vmatprep.subr.mxu0 0.0
        %300 = vmatpush1.msra.mxu0 0.0
        %301 = vmatprep.subr.mxu0 0.0
        %302 = vmatpush1.msra.mxu0 0.0
        %303 = vmatprep.subr.mxu0 0.0
        %304 = vmatpush1.msra.mxu0 0.0
        %305 = vmatprep.mubr.f32.mxu0 0.0
        %v306 = vand.u32 %v152, 4294901760
        %307 = vmatmul.mubr.f32.gmra.mrb[0].mxu0 %v306
        %v308 = vpop.f32.mrb[0].mxu0
        %v309 = vadd.f32 %v228, %v308
        %v310 = vpop.f32.mrb[0].mxu0
        %311 = vdwg.mxu0
        %312 = vmatprep.subr.mxu0 0.0
        %v313 = vand.u32 %v148, 4294901760
        %v314 = vsub.f32 %v148, %v313
        %315 = vmatpush1.msra.mxu0 %v314
        %316 = vmatprep.subr.mxu0 0.0
        %v317 = vand.u32 %v149, 4294901760
        %v318 = vsub.f32 %v149, %v317
        %319 = vmatpush1.msra.mxu0 %v318
        %320 = vmatprep.subr.mxu0 0.0
        %321 = vmatpush1.msra.mxu0 0.0
        %322 = vmatprep.subr.mxu0 0.0
        %323 = vmatpush1.msra.mxu0 0.0
        %324 = vmatprep.subr.mxu0 0.0
        %325 = vmatpush1.msra.mxu0 0.0
        %326 = vmatprep.subr.mxu0 0.0
        %327 = vmatpush1.msra.mxu0 0.0
        %328 = vmatprep.subr.mxu0 0.0
        %329 = vmatpush1.msra.mxu0 0.0
        %330 = vmatprep.subr.mxu0 0.0
        %331 = vmatpush1.msra.mxu0 0.0
        %332 = vmatprep.subr.mxu0 0.0
        %333 = vmatpush1.msra.mxu0 0.0
        %334 = vmatprep.subr.mxu0 0.0
        %335 = vmatpush1.msra.mxu0 0.0
        %336 = vmatprep.subr.mxu0 0.0
        %337 = vmatpush1.msra.mxu0 0.0
        %338 = vmatprep.subr.mxu0 0.0
        %339 = vmatpush1.msra.mxu0 0.0
        %340 = vmatprep.subr.mxu0 0.0
        %341 = vmatpush1.msra.mxu0 0.0
        %342 = vmatprep.subr.mxu0 0.0
        %343 = vmatpush1.msra.mxu0 0.0
        %344 = vmatprep.subr.mxu0 0.0
        %345 = vmatpush1.msra.mxu0 0.0
        %346 = vmatprep.subr.mxu0 0.0
        %347 = vmatpush1.msra.mxu0 0.0
        %348 = vmatprep.subr.mxu0 0.0
        %349 = vmatpush1.msra.mxu0 0.0
        %350 = vmatprep.subr.mxu0 0.0
        %351 = vmatpush1.msra.mxu0 0.0
        %352 = vmatprep.subr.mxu0 0.0
        %353 = vmatpush1.msra.mxu0 0.0
        %354 = vmatprep.subr.mxu0 0.0
        %355 = vmatpush1.msra.mxu0 0.0
        %356 = vmatprep.subr.mxu0 0.0
        %357 = vmatpush1.msra.mxu0 0.0
        %358 = vmatprep.subr.mxu0 0.0
        %359 = vmatpush1.msra.mxu0 0.0
        %360 = vmatprep.subr.mxu0 0.0
        %361 = vmatpush1.msra.mxu0 0.0
        %362 = vmatprep.subr.mxu0 0.0
        %363 = vmatpush1.msra.mxu0 0.0
        %364 = vmatprep.subr.mxu0 0.0
        %365 = vmatpush1.msra.mxu0 0.0
        %366 = vmatprep.subr.mxu0 0.0
        %367 = vmatpush1.msra.mxu0 0.0
        %368 = vmatprep.subr.mxu0 0.0
        %369 = vmatpush1.msra.mxu0 0.0
        %370 = vmatprep.subr.mxu0 0.0
        %371 = vmatpush1.msra.mxu0 0.0
        %372 = vmatprep.subr.mxu0 0.0
        %373 = vmatpush1.msra.mxu0 0.0
        %374 = vmatprep.subr.mxu0 0.0
        %375 = vmatpush1.msra.mxu0 0.0
        %376 = vmatprep.subr.mxu0 0.0
        %377 = vmatpush1.msra.mxu0 0.0
        %378 = vmatprep.subr.mxu0 0.0
        %379 = vmatpush1.msra.mxu0 0.0
        %380 = vmatprep.mubr.f32.mxu0 0.0
        %v381 = vand.u32 %v152, 4294901760
        %v382 = vsub.f32 %v152, %v381
        %383 = vmatmul.mubr.f32.gmra.mrb[0].mxu0 %v382
        %v384 = vpop.f32.mrb[0].mxu0
        %v385 = vadd.f32 %v309, %v384
        %v386 = vpop.f32.mrb[0].mxu0
        %387 = vdwg.mxu0
        %388 = vmatprep.subr.mxu0 0.0
        %v389 = vand.u32 %v148, 4294901760
        %390 = vmatpush1.msra.mxu0 %v389
        %391 = vmatprep.subr.mxu0 0.0
        %v392 = vand.u32 %v149, 4294901760
        %393 = vmatpush1.msra.mxu0 %v392
        %394 = vmatprep.subr.mxu0 0.0
        %395 = vmatpush1.msra.mxu0 0.0
        %396 = vmatprep.subr.mxu0 0.0
        %397 = vmatpush1.msra.mxu0 0.0
        %398 = vmatprep.subr.mxu0 0.0
        %399 = vmatpush1.msra.mxu0 0.0
        %400 = vmatprep.subr.mxu0 0.0
        %401 = vmatpush1.msra.mxu0 0.0
        %402 = vmatprep.subr.mxu0 0.0
        %403 = vmatpush1.msra.mxu0 0.0
        %404 = vmatprep.subr.mxu0 0.0
        %405 = vmatpush1.msra.mxu0 0.0
        %406 = vmatprep.subr.mxu0 0.0
        %407 = vmatpush1.msra.mxu0 0.0
        %408 = vmatprep.subr.mxu0 0.0
        %409 = vmatpush1.msra.mxu0 0.0
        %410 = vmatprep.subr.mxu0 0.0
        %411 = vmatpush1.msra.mxu0 0.0
        %412 = vmatprep.subr.mxu0 0.0
        %413 = vmatpush1.msra.mxu0 0.0
        %414 = vmatprep.subr.mxu0 0.0
        %415 = vmatpush1.msra.mxu0 0.0
        %416 = vmatprep.subr.mxu0 0.0
        %417 = vmatpush1.msra.mxu0 0.0
        %418 = vmatprep.subr.mxu0 0.0
        %419 = vmatpush1.msra.mxu0 0.0
        %420 = vmatprep.subr.mxu0 0.0
        %421 = vmatpush1.msra.mxu0 0.0
        %422 = vmatprep.subr.mxu0 0.0
        %423 = vmatpush1.msra.mxu0 0.0
        %424 = vmatprep.subr.mxu0 0.0
        %425 = vmatpush1.msra.mxu0 0.0
        %426 = vmatprep.subr.mxu0 0.0
        %427 = vmatpush1.msra.mxu0 0.0
        %428 = vmatprep.subr.mxu0 0.0
        %429 = vmatpush1.msra.mxu0 0.0
        %430 = vmatprep.subr.mxu0 0.0
        %431 = vmatpush1.msra.mxu0 0.0
        %432 = vmatprep.subr.mxu0 0.0
        %433 = vmatpush1.msra.mxu0 0.0
        %434 = vmatprep.subr.mxu0 0.0
        %435 = vmatpush1.msra.mxu0 0.0
        %436 = vmatprep.subr.mxu0 0.0
        %437 = vmatpush1.msra.mxu0 0.0
        %438 = vmatprep.subr.mxu0 0.0
        %439 = vmatpush1.msra.mxu0 0.0
        %440 = vmatprep.subr.mxu0 0.0
        %441 = vmatpush1.msra.mxu0 0.0
        %442 = vmatprep.subr.mxu0 0.0
        %443 = vmatpush1.msra.mxu0 0.0
        %444 = vmatprep.subr.mxu0 0.0
        %445 = vmatpush1.msra.mxu0 0.0
        %446 = vmatprep.subr.mxu0 0.0
        %447 = vmatpush1.msra.mxu0 0.0
        %448 = vmatprep.subr.mxu0 0.0
        %449 = vmatpush1.msra.mxu0 0.0
        %450 = vmatprep.subr.mxu0 0.0
        %451 = vmatpush1.msra.mxu0 0.0
        %452 = vmatprep.subr.mxu0 0.0
        %453 = vmatpush1.msra.mxu0 0.0
        %454 = vmatprep.mubr.f32.mxu0 0.0
        %v455 = vand.u32 %v152, 4294901760
        %v456 = vsub.f32 %v152, %v455
        %v457 = vand.u32 %v456, 4294901760
        %458 = vmatmul.mubr.f32.gmra.mrb[0].mxu0 %v457
        %v459 = vpop.f32.mrb[0].mxu0
        %v460 = vadd.f32 %v385, %v459
        %v461 = vpop.f32.mrb[0].mxu0
        %462 = vdwg.mxu0
        %463 = vmatprep.subr.mxu0 0.0
        %v464 = vand.u32 %v148, 4294901760
        %v465 = vsub.f32 %v148, %v464
        %v466 = vand.u32 %v465, 4294901760
        %467 = vmatpush1.msra.mxu0 %v466
        %468 = vmatprep.subr.mxu0 0.0
        %v469 = vand.u32 %v149, 4294901760
        %v470 = vsub.f32 %v149, %v469
        %v471 = vand.u32 %v470, 4294901760
        %472 = vmatpush1.msra.mxu0 %v471
        %473 = vmatprep.subr.mxu0 0.0
        %474 = vmatpush1.msra.mxu0 0.0
        %475 = vmatprep.subr.mxu0 0.0
        %476 = vmatpush1.msra.mxu0 0.0
        %477 = vmatprep.subr.mxu0 0.0
        %478 = vmatpush1.msra.mxu0 0.0
        %479 = vmatprep.subr.mxu0 0.0
        %480 = vmatpush1.msra.mxu0 0.0
        %481 = vmatprep.subr.mxu0 0.0
        %482 = vmatpush1.msra.mxu0 0.0
        %483 = vmatprep.subr.mxu0 0.0
        %484 = vmatpush1.msra.mxu0 0.0
        %485 = vmatprep.subr.mxu0 0.0
        %486 = vmatpush1.msra.mxu0 0.0
        %487 = vmatprep.subr.mxu0 0.0
        %488 = vmatpush1.msra.mxu0 0.0
        %489 = vmatprep.subr.mxu0 0.0
        %490 = vmatpush1.msra.mxu0 0.0
        %491 = vmatprep.subr.mxu0 0.0
        %492 = vmatpush1.msra.mxu0 0.0
        %493 = vmatprep.subr.mxu0 0.0
        %494 = vmatpush1.msra.mxu0 0.0
        %495 = vmatprep.subr.mxu0 0.0
        %496 = vmatpush1.msra.mxu0 0.0
        %497 = vmatprep.subr.mxu0 0.0
        %498 = vmatpush1.msra.mxu0 0.0
        %499 = vmatprep.subr.mxu0 0.0
        %500 = vmatpush1.msra.mxu0 0.0
        %501 = vmatprep.subr.mxu0 0.0
        %502 = vmatpush1.msra.mxu0 0.0
        %503 = vmatprep.subr.mxu0 0.0
        %504 = vmatpush1.msra.mxu0 0.0
        %505 = vmatprep.subr.mxu0 0.0
        %506 = vmatpush1.msra.mxu0 0.0
        %507 = vmatprep.subr.mxu0 0.0
        %508 = vmatpush1.msra.mxu0 0.0
        %509 = vmatprep.subr.mxu0 0.0
        %510 = vmatpush1.msra.mxu0 0.0
        %511 = vmatprep.subr.mxu0 0.0
        %512 = vmatpush1.msra.mxu0 0.0
        %513 = vmatprep.subr.mxu0 0.0
        %514 = vmatpush1.msra.mxu0 0.0
        %515 = vmatprep.subr.mxu0 0.0
        %516 = vmatpush1.msra.mxu0 0.0
        %517 = vmatprep.subr.mxu0 0.0
        %518 = vmatpush1.msra.mxu0 0.0
        %519 = vmatprep.subr.mxu0 0.0
        %520 = vmatpush1.msra.mxu0 0.0
        %521 = vmatprep.subr.mxu0 0.0
        %522 = vmatpush1.msra.mxu0 0.0
        %523 = vmatprep.subr.mxu0 0.0
        %524 = vmatpush1.msra.mxu0 0.0
        %525 = vmatprep.subr.mxu0 0.0
        %526 = vmatpush1.msra.mxu0 0.0
        %527 = vmatprep.subr.mxu0 0.0
        %528 = vmatpush1.msra.mxu0 0.0
        %529 = vmatprep.subr.mxu0 0.0
        %530 = vmatpush1.msra.mxu0 0.0
        %531 = vmatprep.subr.mxu0 0.0
        %532 = vmatpush1.msra.mxu0 0.0
        %533 = vmatprep.mubr.f32.mxu0 0.0
        %v534 = vand.u32 %v152, 4294901760
        %535 = vmatmul.mubr.f32.gmra.mrb[0].mxu0 %v534
        %v536 = vpop.f32.mrb[0].mxu0
        %v537 = vadd.f32 %v460, %v536
        %v538 = vpop.f32.mrb[0].mxu0
        %539 = vdwg.mxu0
        %540 = vmatprep.subr.mxu0 0.0
        %v541 = vand.u32 %v148, 4294901760
        %542 = vmatpush1.msra.mxu0 %v541
        %543 = vmatprep.subr.mxu0 0.0
        %v544 = vand.u32 %v149, 4294901760
        %545 = vmatpush1.msra.mxu0 %v544
        %546 = vmatprep.subr.mxu0 0.0
        %547 = vmatpush1.msra.mxu0 0.0
        %548 = vmatprep.subr.mxu0 0.0
        %549 = vmatpush1.msra.mxu0 0.0
        %550 = vmatprep.subr.mxu0 0.0
        %551 = vmatpush1.msra.mxu0 0.0
        %552 = vmatprep.subr.mxu0 0.0
        %553 = vmatpush1.msra.mxu0 0.0
        %554 = vmatprep.subr.mxu0 0.0
        %555 = vmatpush1.msra.mxu0 0.0
        %556 = vmatprep.subr.mxu0 0.0
        %557 = vmatpush1.msra.mxu0 0.0
        %558 = vmatprep.subr.mxu0 0.0
        %559 = vmatpush1.msra.mxu0 0.0
        %560 = vmatprep.subr.mxu0 0.0
        %561 = vmatpush1.msra.mxu0 0.0
        %562 = vmatprep.subr.mxu0 0.0
        %563 = vmatpush1.msra.mxu0 0.0
        %564 = vmatprep.subr.mxu0 0.0
        %565 = vmatpush1.msra.mxu0 0.0
        %566 = vmatprep.subr.mxu0 0.0
        %567 = vmatpush1.msra.mxu0 0.0
        %568 = vmatprep.subr.mxu0 0.0
        %569 = vmatpush1.msra.mxu0 0.0
        %570 = vmatprep.subr.mxu0 0.0
        %571 = vmatpush1.msra.mxu0 0.0
        %572 = vmatprep.subr.mxu0 0.0
        %573 = vmatpush1.msra.mxu0 0.0
        %574 = vmatprep.subr.mxu0 0.0
        %575 = vmatpush1.msra.mxu0 0.0
        %576 = vmatprep.subr.mxu0 0.0
        %577 = vmatpush1.msra.mxu0 0.0
        %578 = vmatprep.subr.mxu0 0.0
        %579 = vmatpush1.msra.mxu0 0.0
        %580 = vmatprep.subr.mxu0 0.0
        %581 = vmatpush1.msra.mxu0 0.0
        %582 = vmatprep.subr.mxu0 0.0
        %583 = vmatpush1.msra.mxu0 0.0
        %584 = vmatprep.subr.mxu0 0.0
        %585 = vmatpush1.msra.mxu0 0.0
        %586 = vmatprep.subr.mxu0 0.0
        %587 = vmatpush1.msra.mxu0 0.0
        %588 = vmatprep.subr.mxu0 0.0
        %589 = vmatpush1.msra.mxu0 0.0
        %590 = vmatprep.subr.mxu0 0.0
        %591 = vmatpush1.msra.mxu0 0.0
        %592 = vmatprep.subr.mxu0 0.0
        %593 = vmatpush1.msra.mxu0 0.0
        %594 = vmatprep.subr.mxu0 0.0
        %595 = vmatpush1.msra.mxu0 0.0
        %596 = vmatprep.subr.mxu0 0.0
        %597 = vmatpush1.msra.mxu0 0.0
        %598 = vmatprep.subr.mxu0 0.0
        %599 = vmatpush1.msra.mxu0 0.0
        %600 = vmatprep.subr.mxu0 0.0
        %601 = vmatpush1.msra.mxu0 0.0
        %602 = vmatprep.subr.mxu0 0.0
        %603 = vmatpush1.msra.mxu0 0.0
        %604 = vmatprep.subr.mxu0 0.0
        %605 = vmatpush1.msra.mxu0 0.0
        %606 = vmatprep.mubr.f32.mxu0 0.0
        %v607 = vand.u32 %v152, 4294901760
        %608 = vmatmul.mubr.f32.gmra.mrb[0].mxu0 %v607
        %v609 = vpop.f32.mrb[0].mxu0
        %v610 = vadd.f32 %v537, %v609
        %v611 = vpop.f32.mrb[0].mxu0
        %612 = vdwg.mxu0
        %vm613 = vcmask 261120
        %614 = vst.msk [vmem:[%s134] sm:$0xff] %vm613, %v610
        %s615 = sand.u32 %s71, 1
        %s616 = scalar_lea.sflag [#allocation3], %s615
        %s617 = sand.u32 %s71, 1
        %s618 = smul.addr %s617, 8
        %s619 = scalar_lea.vmem [#allocation2], %s618
        // Predicated region
        $region29: #{quantum_embedding_forward.3} parent=27 // pred_check
          %p620 = pneg %p81
        $region30: #{quantum_embedding_forward.3} parent=27 // pred_check_branch
          %622 = sbr.rel (%p620) target = $region32
        $region31: #{quantum_embedding_forward.3} parent=27 // pred_region
          %s624 = ssub.s32 128, 128
          %625 = vsyncadd %s616, %s624
          %s626 = smul.addr %s16, 128
          %s627 = scalar_lea.hbm %s2, %s626
          %s629 = sshll.u32 %s619, 4
          %s630 = int_to_ptr.vmem [resolvable:$true] %s629
          %632 = dma.vmem_to_hbm [thread:$0]  %s630, 128, %s627, %s616
        $region32: #{quantum_embedding_forward.3} parent=27 // pred_fallthru
          _
      $region28: #{quantum_embedding_forward.3} parent=5 // pred_fallthru
        _
      %p633 = scmp.le.s32.totalorder 2, %s11
      // Predicated region
      $region33: #{quantum_embedding_forward.3} parent=5 // pred_check
        %p634 = pneg %p633
      $region34: #{quantum_embedding_forward.3} parent=5 // pred_check_branch
        %636 = sbr.rel (%p634) target = $region36
      $region35: #{quantum_embedding_forward.3} parent=5 // pred_region
        %s637 = ssub.s32 %s11, 2
        // Predicated region
        $region37: #{quantum_embedding_forward.3} parent=35 // pred_check
          %p638 = pneg %p87
        $region38: #{quantum_embedding_forward.3} parent=35 // pred_check_branch
          %640 = sbr.rel (%p638) target = $region40
        $region39: #{quantum_embedding_forward.3} parent=35 // pred_region
          %s641 = sand.u32 %s72, 1
          %s642 = scalar_lea.sflag [#allocation3], %s641
          %s643 = sand.u32 %s72, 1
          %s644 = smul.addr %s643, 8
          %s645 = scalar_lea.vmem [#allocation2], %s644
          %646 = dma.done %s642, 128
        $region40: #{quantum_embedding_forward.3} parent=35 // pred_fallthru
          _
      $region36: #{quantum_embedding_forward.3} parent=5 // pred_fallthru
        _
    $region6: #{quantum_embedding_forward.3} parent=1 // loop_footer
      %s15 = sadd.s32 1, %s11
    $region7: #{quantum_embedding_forward.3} parent=1 // loop_footer_branch
      %10 = sbr.rel target = $region3
    $region8: #{quantum_embedding_forward.3} parent=1 // loop_exit
      _
    %647 = vsyncpa [#allocation3], 1
    %s648 = scalar_lea.sflag [#allocation3], 1
    %649 = vsyncpa %s648, 1

</llo_original>
